<compile_context>
chip_gen: v7x
topology: tpu7x:2x2x1
jax: 0.10.0
libtpu: 0.0.40
codegen_flags: <defaults>
</compile_context>

<pallas_src>
import jax
import jax.numpy as jnp
from jax import lax
from jax.experimental import pallas as pl
from jax.experimental.pallas import tpu as pltpu


# ---------------------------------------------------------------------------
# Static layer sizes of the PyTorch module (per head).
H1 = 32            # layer_1 / layer_4 output width
H2 = 16            # layer_2 / layer_5 output width
FW1 = 2 * H1       # fused hidden-1 width  (64)
FW2 = 2 * H2       # fused hidden-2 width  (32)


def _round_up(n, m):
    return ((n + m - 1) // m) * m


def _param_layout(state_dim, action_dim):
    """Row offsets (16-aligned for bf16 sublane packing) in the weight buffer."""
    feat = state_dim + action_dim
    r_w2 = _round_up(feat, 16)          # fused first-layer section [0, feat)
    r_w3 = r_w2 + FW1                   # block-diag W2|W5 section (64 rows)
    rows = r_w3 + 16                    # (W3|W6)^T section (2 rows used)
    return feat, r_w2, r_w3, rows


def pack_params(params, state_dim, action_dim):
    """Pack weights into ONE (rows, 64) bf16 buffer + ONE (8, 64) f32 bias buffer."""
    feat, r_w2, r_w3, rows = _param_layout(state_dim, action_dim)

    w = jnp.zeros((rows, FW1), jnp.float32)
    # fused first layer: [W1 | W4]  (feat, 64)
    w = w.at[0:feat, :].set(jnp.concatenate([params["w1"], params["w4"]], axis=1))
    # fused second layer: block_diag(W2, W5)  (64, 32)
    w2f = jnp.zeros((FW1, FW2), jnp.float32)
    w2f = w2f.at[0:H1, 0:H2].set(params["w2"])
    w2f = w2f.at[H1:FW1, H2:FW2].set(params["w5"])
    w = w.at[r_w2:r_w2 + FW1, 0:FW2].set(w2f)
    # fused third layer, stored transposed: block_diag(W3, W6)^T  (2, 32)
    w3t = jnp.zeros((2, FW2), jnp.float32)
    w3t = w3t.at[0, 0:H2].set(params["w3"][:, 0])
    w3t = w3t.at[1, H2:FW2].set(params["w6"][:, 0])
    w = w.at[r_w3:r_w3 + 2, 0:FW2].set(w3t)

    bias = jnp.zeros((8, FW1), jnp.float32)
    bias = bias.at[0, :].set(jnp.concatenate([params["b1"], params["b4"]], axis=1)[0])
    bias = bias.at[1, 0:FW2].set(jnp.concatenate([params["b2"], params["b5"]], axis=1)[0])
    bias = bias.at[2, 0].set(params["b3"][0, 0])       # q1 output bias
    bias = bias.at[3, 0].set(params["b6"][0, 0])       # q2 output bias
    return w.astype(jnp.bfloat16), bias


# ---------------------------------------------------------------------------
# Kernel
def _make_kernel(feat, r_w2, r_w3):
    def kernel(xu_ref, w_ref, b_ref, out_ref):
        # Activations cast to bf16 only at the MXU inputs; bias/ReLU stay f32.
        xu = xu_ref[...].astype(jnp.bfloat16)            # (tb, feat)

        # Static, 16-aligned slices of the resident bf16 weight buffer.
        w1 = w_ref[0:feat, :]                            # (feat, 64)
        w2 = w_ref[r_w2:r_w2 + FW1, 0:FW2]               # (64, 32)
        w3t = w_ref[r_w3:r_w3 + 2, 0:FW2]                # (2, 32)
        b1 = b_ref[0:1, :]                               # (1, 64) f32
        b2 = b_ref[1:2, 0:FW2]                           # (1, 32) f32
        b3 = b_ref[2:4, 0:1]                             # (2, 1)  f32

        # fused layers 1/4: single dot over the concatenated features.
        h = jnp.dot(xu, w1, preferred_element_type=jnp.float32) + b1
        h = jnp.maximum(h, 0.0)                          # (tb, 64)

        # fused layers 2/5 (block-diagonal weights).
        g = jnp.dot(h.astype(jnp.bfloat16), w2,
                    preferred_element_type=jnp.float32) + b2
        g = jnp.maximum(g, 0.0)                          # (tb, 32)

        # fused layers 3/6: A @ B^T form (contraction on both minor dims) -> the
        # MXU-native orientation; g is stationary, only 2 rows are streamed, and
        # the result is already lane-dense (2, tb) for the output store.
        qT = lax.dot_general(
            w3t, g.astype(jnp.bfloat16),
            dimension_numbers=(((1,), (1,)), ((), ())),
            preferred_element_type=jnp.float32) + b3
        out_ref[...] = qT.astype(out_ref.dtype)

    return kernel


# ---------------------------------------------------------------------------
# Wrapper
def critic_forward(x, u, w_packed, bias, *, state_dim, action_dim, block_b=4096):
    """x: (B, state_dim), u: (B, action_dim) -> (q1, q2), each (B, 1) f32.

    block_b must be a multiple of 128 (lane-dense (2, tb) output blocks).
    """
    B = x.shape[0]
    feat, r_w2, r_w3, rows = _param_layout(state_dim, action_dim)
    assert w_packed.shape == (rows, FW1) and bias.shape == (8, FW1)

    # One concatenated input -> layer 1 is a single MXU dot, one input DMA.
    xu = jnp.concatenate([x, u], axis=1)                 # (B, feat)

    if B <= 256:
        # Tiny batch: one block (full-array-dim exemption from (8,128) rule).
        tb = B
    else:
        # At least 2 grid steps so ("parallel",) shards across both v7x cores;
        # tb is a multiple of 128 so the (2, tb) output block is legal.
        tb = min(block_b, _round_up(pl.cdiv(B, 2), 128))
    grid = (pl.cdiv(B, tb),)   # partial final block handled by Pallas (no jnp.pad)

    out = pl.pallas_call(
        _make_kernel(feat, r_w2, r_w3),
        out_shape=jax.ShapeDtypeStruct((2, B), jnp.float32),
        grid=grid,
        in_specs=[
            pl.BlockSpec((tb, feat), lambda i: (i, 0)),   # xu batch tile
            pl.BlockSpec((rows, FW1), lambda i: (0, 0)),  # bf16 weights, resident
            pl.BlockSpec((8, FW1), lambda i: (0, 0)),     # f32 biases, resident
        ],
        out_specs=pl.BlockSpec((2, tb), lambda i: (0, i)),  # lane-dense (2, B)
        compiler_params=pltpu.CompilerParams(
            dimension_semantics=("parallel",),            # megacore on v7x
            vmem_limit_bytes=32 * 1024 * 1024),           # explicit (v5e default 16M)
    )(xu, w_packed, bias)

    q1 = out[0, :].reshape(B, 1)
    q2 = out[1, :].reshape(B, 1)
    return q1, q2


# ---------------------------------------------------------------------------
# Parameter init (mimics nn.Linear's U(-1/sqrt(fan_in), 1/sqrt(fan_in))) and a
# plain-JAX reference for correctness checking.
def init_params(key, state_dim, action_dim):
    dims = [(state_dim + action_dim, H1), (H1, H2), (H2, 1),   # layers 1-3
            (state_dim + action_dim, H1), (H1, H2), (H2, 1)]   # layers 4-6
    params = {}
    keys = jax.random.split(key, 2 * len(dims))
    for i, (fan_in, fan_out) in enumerate(dims):
        bound = 1.0 / jnp.sqrt(float(fan_in))
        params[f"w{i + 1}"] = jax.random.uniform(
            keys[2 * i], (fan_in, fan_out), jnp.float32, -bound, bound)
        params[f"b{i + 1}"] = jax.random.uniform(
            keys[2 * i + 1], (1, fan_out), jnp.float32, -bound, bound)
    return params


def critic_reference(x, u, params, dot_dtype=jnp.float32):
    xu = jnp.concatenate([x, u], axis=1)

    def lin(a, w, b):
        return jnp.dot(a.astype(dot_dtype), w.astype(dot_dtype),
                       preferred_element_type=jnp.float32) + b

    h = jax.nn.relu(lin(xu, params["w1"], params["b1"]))
    h = jax.nn.relu(lin(h, params["w2"], params["b2"]))
    q1 = lin(h, params["w3"], params["b3"])
    g = jax.nn.relu(lin(xu, params["w4"], params["b4"]))
    g = jax.nn.relu(lin(g, params["w5"], params["b5"]))
    q2 = lin(g, params["w6"], params["b6"])
    return q1, q2


if __name__ == "__main__":
    state_dim, action_dim = 12, 4

    key = jax.random.PRNGKey(0)
    k_param, k_x, k_u = jax.random.split(key, 3)
    params = init_params(k_param, state_dim, action_dim)
    w_packed, bias = pack_params(params, state_dim, action_dim)

    # --- small single-block case (batch = 2) ---
    x = jax.random.normal(k_x, (2, state_dim), jnp.float32)
    u = jax.random.normal(k_u, (2, action_dim), jnp.float32)
    q1, q2 = critic_forward(x, u, w_packed, bias,
                            state_dim=state_dim, action_dim=action_dim)
    jax.block_until_ready((q1, q2))

    q1_bf, q2_bf = critic_reference(x, u, params, dot_dtype=jnp.bfloat16)
    q1_f32, q2_f32 = critic_reference(x, u, params, dot_dtype=jnp.float32)
    assert q1.shape == (2, 1) and q2.shape == (2, 1)
    assert jnp.allclose(q1, q1_bf, atol=2e-3, rtol=2e-3), "Q1 mismatch (bf16 ref)"
    assert jnp.allclose(q2, q2_bf, atol=2e-3, rtol=2e-3), "Q2 mismatch (bf16 ref)"
    assert jnp.allclose(q1, q1_f32, atol=5e-2, rtol=5e-2), "Q1 drift vs f32 ref"
    assert jnp.allclose(q2, q2_f32, atol=5e-2, rtol=5e-2), "Q2 drift vs f32 ref"

    # --- multi-step grid with a partial final block (no jnp.pad path) ---
    xb = jax.random.normal(k_x, (320, state_dim), jnp.float32)
    ub = jax.random.normal(k_u, (320, action_dim), jnp.float32)
    q1b, q2b = critic_forward(xb, ub, w_packed, bias,
                              state_dim=state_dim, action_dim=action_dim,
                              block_b=128)   # grid = (3,), last block is partial
    jax.block_until_ready((q1b, q2b))
    r1, r2 = critic_reference(xb, ub, params, dot_dtype=jnp.bfloat16)
    assert q1b.shape == (320, 1) and q2b.shape == (320, 1)
    assert jnp.allclose(q1b, r1, atol=2e-3, rtol=2e-3), "Q1 mismatch (multi-block)"
    assert jnp.allclose(q2b, r2, atol=2e-3, rtol=2e-3), "Q2 mismatch (multi-block)"

    print("KERNEL_OK")
</pallas_src>

<mosaic_0001>
module attributes {stable_mosaic.version = 11 : i64} {
  func.func @kernel(%arg0: i32, %arg1: memref<2x16xf32, #tpu.memory_space<vmem>>, %arg2: memref<96x64xbf16, #tpu.memory_space<vmem>>, %arg3: memref<8x64xf32, #tpu.memory_space<vmem>>, %arg4: memref<2x2xf32, #tpu.memory_space<vmem>>) attributes {dimension_semantics = [#tpu.dimension_semantics<parallel>], iteration_bounds = array<i64: 1>, scalar_prefetch = 0 : i64, scratch_operands = 0 : i64, tpu.core_type = #tpu.core_type<tc>, window_params = [{transform_indices = @transform_0, window_bounds = array<i64: 2, 16>}, {pipeline_mode = #tpu.pipeline_mode<synchronous>, transform_indices = @transform_1, window_bounds = array<i64: 96, 64>}, {pipeline_mode = #tpu.pipeline_mode<synchronous>, transform_indices = @transform_2, window_bounds = array<i64: 8, 64>}, {transform_indices = @transform_3, window_bounds = array<i64: 2, 2>}]} {
    %c0 = arith.constant 0 : index
    %c0_0 = arith.constant 0 : index
    %0 = vector.load %arg1[%c0, %c0_0] : memref<2x16xf32, #tpu.memory_space<vmem>>, vector<2x16xf32>
    %1 = arith.truncf %0 : vector<2x16xf32> to vector<2x16xbf16>
    %c0_1 = arith.constant 0 : index
    %c0_2 = arith.constant 0 : index
    %2 = vector.load %arg2[%c0_1, %c0_2] : memref<96x64xbf16, #tpu.memory_space<vmem>>, vector<16x64xbf16>
    %c16 = arith.constant 16 : index
    %c0_3 = arith.constant 0 : index
    %3 = vector.load %arg2[%c16, %c0_3] : memref<96x64xbf16, #tpu.memory_space<vmem>>, vector<64x32xbf16>
    %c80 = arith.constant 80 : index
    %c0_4 = arith.constant 0 : index
    %4 = vector.load %arg2[%c80, %c0_4] : memref<96x64xbf16, #tpu.memory_space<vmem>>, vector<2x32xbf16>
    %c0_5 = arith.constant 0 : index
    %c0_6 = arith.constant 0 : index
    %5 = vector.load %arg3[%c0_5, %c0_6] : memref<8x64xf32, #tpu.memory_space<vmem>>, vector<1x64xf32>
    %c1 = arith.constant 1 : index
    %c0_7 = arith.constant 0 : index
    %6 = vector.load %arg3[%c1, %c0_7] : memref<8x64xf32, #tpu.memory_space<vmem>>, vector<1x32xf32>
    %c2 = arith.constant 2 : index
    %c0_8 = arith.constant 0 : index
    %7 = vector.load %arg3[%c2, %c0_8] : memref<8x64xf32, #tpu.memory_space<vmem>>, vector<2x1xf32>
    %cst = arith.constant dense<0.000000e+00> : vector<2x64xf32>
    %8 = tpu.matmul %1, %2, %cst {dimension_numbers = #tpu.dot_dimension_numbers<[1], [0], [0], [1], [0, 0, 1, 1], [], []>} : vector<2x16xbf16>, vector<16x64xbf16>, vector<2x64xf32> -> vector<2x64xf32>
    %9 = vector.broadcast %5 : vector<1x64xf32> to vector<2x64xf32>
    %10 = arith.addf %8, %9 : vector<2x64xf32>
    %cst_9 = arith.constant 0.000000e+00 : f32
    %11 = vector.broadcast %cst_9 : f32 to vector<2x64xf32>
    %12 = arith.maximumf %10, %11 : vector<2x64xf32>
    %13 = arith.truncf %12 : vector<2x64xf32> to vector<2x64xbf16>
    %cst_10 = arith.constant dense<0.000000e+00> : vector<2x32xf32>
    %14 = tpu.matmul %13, %3, %cst_10 {dimension_numbers = #tpu.dot_dimension_numbers<[1], [0], [0], [1], [0, 0, 1, 1], [], []>} : vector<2x64xbf16>, vector<64x32xbf16>, vector<2x32xf32> -> vector<2x32xf32>
    %15 = vector.broadcast %6 : vector<1x32xf32> to vector<2x32xf32>
    %16 = arith.addf %14, %15 : vector<2x32xf32>
    %cst_11 = arith.constant 0.000000e+00 : f32
    %17 = vector.broadcast %cst_11 : f32 to vector<2x32xf32>
    %18 = arith.maximumf %16, %17 : vector<2x32xf32>
    %19 = arith.truncf %18 : vector<2x32xf32> to vector<2x32xbf16>
    %cst_12 = arith.constant dense<0.000000e+00> : vector<2x2xf32>
    %20 = tpu.matmul %4, %19, %cst_12 {dimension_numbers = #tpu.dot_dimension_numbers<[1], [1], [0], [0], [0, 0, 1, 0], [], []>} : vector<2x32xbf16>, vector<2x32xbf16>, vector<2x2xf32> -> vector<2x2xf32>
    %21 = vector.broadcast %7 : vector<2x1xf32> to vector<2x2xf32>
    %22 = arith.addf %20, %21 : vector<2x2xf32>
    %c0_13 = arith.constant 0 : index
    %c0_14 = arith.constant 0 : index
    %23 = vector.load %arg4[%c0_13, %c0_14] : memref<2x2xf32, #tpu.memory_space<vmem>>, vector<2x2xf32>
    tpu.vector_store %arg4[%c0_13, %c0_14], %22 {strides = array<i32>} : memref<2x2xf32, #tpu.memory_space<vmem>>, vector<2x2xf32>,
    return
  }
  func.func @transform_0(%arg0: i32) -> (i32, i32) {
    %c0_i32 = arith.constant 0 : i32
    %c0_i32_0 = arith.constant 0 : i32
    return %arg0, %c0_i32 : i32, i32
  }
  func.func @transform_1(%arg0: i32) -> (i32, i32) {
    %c0_i32 = arith.constant 0 : i32
    %c0_i32_0 = arith.constant 0 : i32
    %c0_i32_1 = arith.constant 0 : i32
    return %c0_i32, %c0_i32_0 : i32, i32
  }
  func.func @transform_2(%arg0: i32) -> (i32, i32) {
    %c0_i32 = arith.constant 0 : i32
    %c0_i32_0 = arith.constant 0 : i32
    %c0_i32_1 = arith.constant 0 : i32
    return %c0_i32, %c0_i32_0 : i32, i32
  }
  func.func @transform_3(%arg0: i32) -> (i32, i32) {
    %c0_i32 = arith.constant 0 : i32
    %c0_i32_0 = arith.constant 0 : i32
    return %c0_i32, %arg0 : i32, i32
  }
}

</mosaic_0001>

<llo_original>
// kernel: tpu_custom_call.1
$region0: #{tpu_custom_call.1}
  #allocation0 [shape = 'u32[]', space=smem, size = 0x4, offset = 0x4, fixed_abs, tag = 'smem constant byte address 0x4 - core index']
  #allocation1 [shape = 'u32[144,128]{1,0:T(1,128)}', space=vmem, size = 0x12000, scoped, tag = 'internal scratch']
  %s0 = inlined_call_operand.vmem [shape: f32[2,16], index: 0, kind: input, shape index: {}]
  %s1 = inlined_call_operand.vmem [shape: bf16[96,64], index: 1, kind: input, shape index: {}]
  %s2 = inlined_call_operand.vmem [shape: f32[8,64], index: 2, kind: input, shape index: {}]
  %s3 = inlined_call_operand.hbm [shape: f32[2,2], index: 3, kind: output, shape index: {}]
  %s4 = sld [smem:[#allocation0]]
  $region22: #{tpu_custom_call.1} parent=0
    _
  %s6 = ssub.s32 1, %s4
  %s7 = scalar_select 0, %s6, %s4
  $region1: #{tpu_custom_call.1} parent=0
    #allocation2 [shape = 'u8[1024]{0}', space=vmem, size = 0x400, scoped, tag = 'output window, operand 0, single buffered']
    #allocation3 [shape = 's32[1]{0}', space=sflag, size = 0x4, scoped, tag = 'scoped memory for tpu_custom_call.1']
    %8 = vsyncpa [#allocation3], 0
    // Predicated region
    $region2: #{tpu_custom_call.1} parent=1 // pred_check
      _
    $region3: #{tpu_custom_call.1} parent=1 // pred_check_branch
      %10 = sbr.rel (0) target = $region5
    $region4: #{tpu_custom_call.1} parent=1 // pred_region
      _
    $region5: #{tpu_custom_call.1} parent=1 // pred_fallthru
      _
    // Predicated region
    $region6: #{tpu_custom_call.1} parent=1 // pred_check
      _
    $region7: #{tpu_custom_call.1} parent=1 // pred_check_branch
      %12 = sbr.rel (0) target = $region9
    $region8: #{tpu_custom_call.1} parent=1 // pred_region
      _
    $region9: #{tpu_custom_call.1} parent=1 // pred_fallthru
      _
    // Predicated region
    $region10: #{tpu_custom_call.1} parent=1 // pred_check
      _
    $region11: #{tpu_custom_call.1} parent=1 // pred_check_branch
      %14 = sbr.rel (0) target = $region13
    $region12: #{tpu_custom_call.1} parent=1 // pred_region
      _
    $region13: #{tpu_custom_call.1} parent=1 // pred_fallthru
      _
    %v16 = vld [vmem:[%s0] sm:$0x3]
    %v17 = vpack.c.bf16 %v16, %v16
    %v18 = vld [vmem:[%s1] sm:$0xf]
    %v19 = vld [vmem:[%s1 + $0x4] sm:$0xf]
    %v20 = vld [vmem:[%s1 + $0x8] sm:$0xf]
    %v21 = vld [vmem:[%s1 + $0xc] sm:$0xf]
    %v22 = vld [vmem:[%s1 + $0x10] sm:$0xf]
    %v23 = vld [vmem:[%s1 + $0x14] sm:$0xf]
    %v24 = vld [vmem:[%s1 + $0x18] sm:$0xf]
    %v25 = vld [vmem:[%s1 + $0x1c] sm:$0xf]
    %v26 = vld [vmem:[%s1 + $0x20] sm:$0xf]
    %v27 = vld [vmem:[%s1 + $0x24] sm:$0xf]
    %v28 = vld [vmem:[%s1 + $0x28] sm:$0x1]
    %v29 = vld [vmem:[%s2] sm:$0x1]
    %v30 = vld [vmem:[%s2 + $0x1] sm:$0x1]
    %v31 = vld [vmem:[%s2 + $0x2] sm:$0x3]
    %v32 = vlaneseq
    %v33 = vshrl.u32 %v32, 7
    %v34 = vsub.s32 0, %v33
    %v35 = vrot.slane %v29, %v34
    %v38 = vunpack.c.l.b16 %v18
    %v39 = vunpack.c.l.b16 %v19
    %v40 = vpack.c.b16 %v39, %v38
    %vm42 = vcmask 130048
    %v44 = vsel %vm42, %v17, 0
    %46 = vmatprep.subr.bf16.mxu0 0
    %47 = vmatpush1.bf16.msra.mxu0 %v40
    %48 = vmatprep.subr.bf16.mxu0 0
    %49 = vmatpush1.bf16.msra.mxu0 0
    %50 = vmatprep.subr.bf16.mxu0 0
    %51 = vmatpush1.bf16.msra.mxu0 0
    %52 = vmatprep.subr.bf16.mxu0 0
    %53 = vmatpush1.bf16.msra.mxu0 0
    %54 = vmatprep.subr.bf16.mxu0 0
    %55 = vmatpush1.bf16.msra.mxu0 0
    %56 = vmatprep.subr.bf16.mxu0 0
    %57 = vmatpush1.bf16.msra.mxu0 0
    %58 = vmatprep.subr.bf16.mxu0 0
    %59 = vmatpush1.bf16.msra.mxu0 0
    %60 = vmatprep.subr.bf16.mxu0 0
    %61 = vmatpush1.bf16.msra.mxu0 0
    %62 = vmatprep.subr.bf16.mxu0 0
    %63 = vmatpush1.bf16.msra.mxu0 0
    %64 = vmatprep.subr.bf16.mxu0 0
    %65 = vmatpush1.bf16.msra.mxu0 0
    %66 = vmatprep.subr.bf16.mxu0 0
    %67 = vmatpush1.bf16.msra.mxu0 0
    %68 = vmatprep.subr.bf16.mxu0 0
    %69 = vmatpush1.bf16.msra.mxu0 0
    %70 = vmatprep.subr.bf16.mxu0 0
    %71 = vmatpush1.bf16.msra.mxu0 0
    %72 = vmatprep.subr.bf16.mxu0 0
    %73 = vmatpush1.bf16.msra.mxu0 0
    %74 = vmatprep.subr.bf16.mxu0 0
    %75 = vmatpush1.bf16.msra.mxu0 0
    %76 = vmatprep.subr.bf16.mxu0 0
    %77 = vmatpush1.bf16.msra.mxu0 0
    %78 = vmatprep.mubr.bf16.mxu0 0
    %79 = vmatmul.mubr.bf16.gmra.mrb[0].mxu0 %v44
    %v80 = vpop.f32.mrb[0].mxu0
    %v81 = vadd.f32 %v35, %v80
    %v82 = vpop.f32.mrb[0].mxu0
    %v83 = vpop.f32.mrb[0].mxu0
    %v84 = vpop.f32.mrb[0].mxu0
    %85 = vdwg.mxu0
    %v86 = vmax.f32 %v81, 0.0
    %v87 = vpack.c.bf16 %v86, %v86
    %v88 = vlaneseq
    %v89 = vshrl.u32 %v88, 7
    %v90 = vsub.s32 0, %v89
    %v91 = vrot.slane %v30, %v90
    %v100 = vunpack.c.l.b16 %v20
    %v101 = vunpack.c.l.b16 %v21
    %v102 = vunpack.c.l.b16 %v22
    %v103 = vunpack.c.l.b16 %v23
    %v104 = vunpack.c.l.b16 %v24
    %v105 = vunpack.c.l.b16 %v25
    %v106 = vunpack.c.l.b16 %v26
    %v107 = vunpack.c.l.b16 %v27
    %v108 = vpack.c.b16 %v101, %v100
    %v109 = vpack.c.b16 %v103, %v102
    %v110 = vpack.c.b16 %v105, %v104
    %v111 = vpack.c.b16 %v107, %v106
    %vm116 = vcmask 523264
    %v118 = vsel %vm116, %v87, 0
    %120 = vmatprep.subr.bf16.mxu0 0
    %121 = vmatpush1.bf16.msra.mxu0 %v108
    %122 = vmatprep.subr.bf16.mxu0 0
    %123 = vmatpush1.bf16.msra.mxu0 %v109
    %124 = vmatprep.subr.bf16.mxu0 0
    %125 = vmatpush1.bf16.msra.mxu0 %v110
    %126 = vmatprep.subr.bf16.mxu0 0
    %127 = vmatpush1.bf16.msra.mxu0 %v111
    %128 = vmatprep.subr.bf16.mxu0 0
    %129 = vmatpush1.bf16.msra.mxu0 0
    %130 = vmatprep.subr.bf16.mxu0 0
    %131 = vmatpush1.bf16.msra.mxu0 0
    %132 = vmatprep.subr.bf16.mxu0 0
    %133 = vmatpush1.bf16.msra.mxu0 0
    %134 = vmatprep.subr.bf16.mxu0 0
    %135 = vmatpush1.bf16.msra.mxu0 0
    %136 = vmatprep.subr.bf16.mxu0 0
    %137 = vmatpush1.bf16.msra.mxu0 0
    %138 = vmatprep.subr.bf16.mxu0 0
    %139 = vmatpush1.bf16.msra.mxu0 0
    %140 = vmatprep.subr.bf16.mxu0 0
    %141 = vmatpush1.bf16.msra.mxu0 0
    %142 = vmatprep.subr.bf16.mxu0 0
    %143 = vmatpush1.bf16.msra.mxu0 0
    %144 = vmatprep.subr.bf16.mxu0 0
    %145 = vmatpush1.bf16.msra.mxu0 0
    %146 = vmatprep.subr.bf16.mxu0 0
    %147 = vmatpush1.bf16.msra.mxu0 0
    %148 = vmatprep.subr.bf16.mxu0 0
    %149 = vmatpush1.bf16.msra.mxu0 0
    %150 = vmatprep.subr.bf16.mxu0 0
    %151 = vmatpush1.bf16.msra.mxu0 0
    %152 = vmatprep.mubr.bf16.mxu0 0
    %153 = vmatmul.mubr.bf16.gmra.mrb[0].mxu0 %v118
    %v154 = vpop.f32.mrb[0].mxu0
    %v155 = vadd.f32 %v91, %v154
    %v156 = vpop.f32.mrb[0].mxu0
    %v157 = vpop.f32.mrb[0].mxu0
    %v158 = vpop.f32.mrb[0].mxu0
    %159 = vdwg.mxu0
    %v160 = vmax.f32 %v155, 0.0
    %v161 = vpack.c.bf16 %v160, %v160
    %163 = vset.pattern.permute.xlu0 0
    %164 = vperm.xlu0 %163, %v31
    %v165 = vpop.permute.xlu0 %164
    %vm167 = vcmask 261120
    %v169 = vsel %vm167, %v28, 0
    %v172 = vsel %vm167, %v161, 0
    %174 = vmatprep.subr.bf16.mxu0 0
    %175 = vmatpush1.bf16.xpose.msra.mxu0 %v172
    %176 = vmatprep.subr.bf16.mxu0 0
    %177 = vmatpush1.bf16.xpose.msra.mxu0 0
    %178 = vmatprep.subr.bf16.mxu0 0
    %179 = vmatpush1.bf16.xpose.msra.mxu0 0
    %180 = vmatprep.subr.bf16.mxu0 0
    %181 = vmatpush1.bf16.xpose.msra.mxu0 0
    %182 = vmatprep.subr.bf16.mxu0 0
    %183 = vmatpush1.bf16.xpose.msra.mxu0 0
    %184 = vmatprep.subr.bf16.mxu0 0
    %185 = vmatpush1.bf16.xpose.msra.mxu0 0
    %186 = vmatprep.subr.bf16.mxu0 0
    %187 = vmatpush1.bf16.xpose.msra.mxu0 0
    %188 = vmatprep.subr.bf16.mxu0 0
    %189 = vmatpush1.bf16.xpose.msra.mxu0 0
    %190 = vmatprep.subr.bf16.mxu0 0
    %191 = vmatpush1.bf16.xpose.msra.mxu0 0
    %192 = vmatprep.subr.bf16.mxu0 0
    %193 = vmatpush1.bf16.xpose.msra.mxu0 0
    %194 = vmatprep.subr.bf16.mxu0 0
    %195 = vmatpush1.bf16.xpose.msra.mxu0 0
    %196 = vmatprep.subr.bf16.mxu0 0
    %197 = vmatpush1.bf16.xpose.msra.mxu0 0
    %198 = vmatprep.subr.bf16.mxu0 0
    %199 = vmatpush1.bf16.xpose.msra.mxu0 0
    %200 = vmatprep.subr.bf16.mxu0 0
    %201 = vmatpush1.bf16.xpose.msra.mxu0 0
    %202 = vmatprep.subr.bf16.mxu0 0
    %203 = vmatpush1.bf16.xpose.msra.mxu0 0
    %204 = vmatprep.subr.bf16.mxu0 0
    %205 = vmatpush1.bf16.xpose.msra.mxu0 0
    %206 = vmatprep.mubr.bf16.mxu0 0
    %207 = vmatmul.mubr.bf16.gmra.mrb[0].mxu0 %v169
    %v208 = vpop.f32.mrb[0].mxu0
    %v209 = vadd.f32 %v165, %v208
    %v210 = vpop.f32.mrb[0].mxu0
    %v211 = vpop.f32.mrb[0].mxu0
    %v212 = vpop.f32.mrb[0].mxu0
    %213 = vdwg.mxu0
    %vm214 = vcmask 9216
    %215 = vst.msk [vmem:[#allocation2] sm:$0x3] %vm214, %v209
    // Predicated region
    $region14: #{tpu_custom_call.1} parent=1 // pred_check
      _
    $region15: #{tpu_custom_call.1} parent=1 // pred_check_branch
      %217 = sbr.rel (0) target = $region17
    $region16: #{tpu_custom_call.1} parent=1 // pred_region
      %s219 = ssub.s32 32, 32
      %220 = vsyncadd [#allocation3], %s219
      %s222 = sshll.u32 [#allocation2], 4
      %s223 = int_to_ptr.vmem [resolvable:$true] %s222
      %225 = dma.vmem_to_hbm [thread:$0]  %s223, 32, %s3, [#allocation3]
    $region17: #{tpu_custom_call.1} parent=1 // pred_fallthru
      _
    // Predicated region
    $region18: #{tpu_custom_call.1} parent=1 // pred_check
      _
    $region19: #{tpu_custom_call.1} parent=1 // pred_check_branch
      %227 = sbr.rel (0) target = $region21
    $region20: #{tpu_custom_call.1} parent=1 // pred_region
      %228 = dma.done [#allocation3], 32
    $region21: #{tpu_custom_call.1} parent=1 // pred_fallthru
      _
    %229 = vsyncpa [#allocation3], 1

</llo_original>
